<compile_context>
chip_gen: v5e
topology: v5e:2x2
jax: 0.10.0
libtpu: 0.0.40
codegen_flags: <defaults>
</compile_context>

<pallas_src>
import functools

import numpy as np
import jax
import jax.numpy as jnp
from jax import lax
from jax.experimental import pallas as pl
from jax.experimental.pallas import tpu as pltpu

# ---- neuron hyper-parameters (deterministic, from __init__ defaults) --------
A = 1.0          # self.a
B = 1.0          # self.b
V_THRESHOLD = 1.0
V_RESET = 0.0    # hard reset (v_reset is not None)

LANE = 128
SUBLANE = 8
SUB_ROWS = 32          # row sub-tile carried in vregs (4 f32 vregs for v)
MAX_ROW_TILE = 256     # per-block row cap (DMA granularity, not vreg pressure)
# Per-block (time*rows) element budget: block bytes = BLOCK_TR_ELEMS*LANE*4
# = 4 MiB -> ~16-20 MiB resident with double-buffered in+out, safe on all
# generations.  v5e/v6e (128 MiB VMEM) could sweep 16-32K; keep 8K for v7x.
BLOCK_TR_ELEMS = 8192


def _linear_node_kernel(x_ref, spike_ref, v_ref, *, sub_rows, unroll):
    """One (row-tile, time-chunk) grid point.

    Grid contract (do NOT reorder): axis 0 = row tiles ("parallel"),
    axis 1 = time chunks ("arbitrary", innermost).  The membrane potential is
    carried across time chunks in the v_ref scratch, which is only valid while
    all time chunks of a row tile execute back-to-back on one core.
    """
    tc = pl.program_id(1)
    first_chunk = tc == 0
    not_last_chunk = tc + 1 < pl.num_programs(1)
    t_chunk, tr, _ = x_ref.shape          # static
    n_sub = tr // sub_rows

    @pl.loop(0, n_sub)
    def _(s):
        r0 = pl.multiple_of(s * sub_rows, sub_rows)
        rows = pl.ds(r0, sub_rows)

        # v stays in vregs across the whole time chunk: one scratch read here,
        # at most one scratch write below.  At the first chunk the scratch is
        # uninitialized, so select v_reset instead of storing + reloading it.
        # TODO(synk): accumulation is in f32; for bf16 inputs this can differ
        # from a strict x.dtype-accumulating reference near the threshold.
        v0 = jnp.where(first_chunk, jnp.float32(V_RESET), v_ref[rows, :])

        def step(t, v):
            x = x_ref[t, rows, :].astype(jnp.float32)
            if A != 1.0:                    # folded at trace time (a=b=1.0)
                v = v * jnp.float32(A)
            if B != 1.0:
                x = x * jnp.float32(B)
            v = v + x                                   # neuronal_charge
            fired = v >= V_THRESHOLD                    # Heaviside forward
            spike_ref[t, rows, :] = fired.astype(spike_ref.dtype)
            return jnp.where(fired, jnp.float32(V_RESET), v)   # hard reset

        v_final = lax.fori_loop(0, t_chunk, step, v0, unroll=unroll)

        # The carry is dead after the last time chunk; skip the writeback.
        @pl.when(not_last_chunk)
        def _():
            v_ref[rows, :] = v_final


def _pick_tiles(T: int, rows: int) -> tuple[int, int, int]:
    """Pick (row_tile, row_subtile, time_chunk).  No exact-divisor constraints:
    the grid is cdiv-based and Pallas masks the trailing partial blocks."""
    rows8 = int(pl.cdiv(rows, SUBLANE)) * SUBLANE
    sub = min(SUB_ROWS, rows8)                          # rows carried in vregs
    tr = min(MAX_ROW_TILE, int(pl.cdiv(rows8, sub)) * sub)
    n_tiles = int(pl.cdiv(rows8, tr))
    # v7x megacore balance: prefer an even row-tile count on the parallel axis.
    if n_tiles > 1 and n_tiles % 2 == 1:
        tr = max(sub, int(pl.cdiv(int(pl.cdiv(rows8, n_tiles + 1)), sub)) * sub)
    t_chunk = max(1, min(T, BLOCK_TR_ELEMS // tr))
    return tr, sub, t_chunk


def linear_node_multi_step(x_seq: jax.Array) -> jax.Array:
    """Multi-step LinearNode forward. x_seq: (T, ...) float. Returns spikes."""
    orig_shape = x_seq.shape
    T = int(orig_shape[0])
    M = int(np.prod(orig_shape[1:]))

    # Flatten non-time dims into a lane-dense (rows, 128) slab.  Only pad the
    # (at most 127 element) lane tail; sublane raggedness is handled by the
    # cdiv grid + Pallas partial-block masking (no extra HBM copies).
    x2 = jnp.reshape(x_seq, (T, M))
    M_pad = int(pl.cdiv(M, LANE)) * LANE
    if M_pad != M:
        # TODO(synk): the <=127-element lane tail could use an in-kernel masked
        # store instead of this pad+slice HBM round trip.
        x2 = jnp.pad(x2, ((0, 0), (0, M_pad - M)))
    rows = M_pad // LANE
    x3 = jnp.reshape(x2, (T, rows, LANE))

    tr, sub, t_chunk = _pick_tiles(T, rows)
    grid = (int(pl.cdiv(rows, tr)), int(pl.cdiv(T, t_chunk)))
    time_unroll = t_chunk if t_chunk <= 8 else 4

    # VMEM budget: double-buffered input + output blocks + v scratch + margin.
    itemsize = jnp.dtype(x_seq.dtype).itemsize
    block_bytes = t_chunk * tr * LANE * itemsize
    vmem_needed = 2 * 2 * block_bytes + tr * LANE * 4 + (4 << 20)
    vmem_limit = int(min(max(vmem_needed, 16 << 20), 48 << 20))

    kernel = functools.partial(_linear_node_kernel,
                               sub_rows=sub, unroll=time_unroll)

    spikes = pl.pallas_call(
        kernel,
        out_shape=jax.ShapeDtypeStruct((T, rows, LANE), x_seq.dtype),
        grid_spec=pltpu.PrefetchScalarGridSpec(
            num_scalar_prefetch=0,
            grid=grid,
            in_specs=[pl.BlockSpec((t_chunk, tr, LANE), lambda i, c: (c, i, 0))],
            out_specs=pl.BlockSpec((t_chunk, tr, LANE), lambda i, c: (c, i, 0)),
            scratch_shapes=[pltpu.VMEM((tr, LANE), jnp.float32)],
        ),
        compiler_params=pltpu.CompilerParams(
            # Time MUST stay the innermost, "arbitrary" axis: the v scratch
            # carries the recurrence across time chunks of one row tile.
            dimension_semantics=("parallel", "arbitrary"),
            vmem_limit_bytes=vmem_limit,
        ),
    )(x3)

    spikes = jnp.reshape(spikes, (T, M_pad))
    if M_pad != M:
        spikes = spikes[:, :M]
    return jnp.reshape(spikes, orig_shape)


def _reference(x_seq: jax.Array) -> jax.Array:
    """Plain-JAX reference of jit_eval_multi_step_forward_hard_reset."""
    def step(v, x):
        v = A * v + B * x
        spike = (v >= V_THRESHOLD).astype(x.dtype)
        v = V_RESET * spike + (1.0 - spike) * v
        return v, spike
    v0 = jnp.full(x_seq.shape[1:], V_RESET, dtype=x_seq.dtype)
    _, spikes = jax.lax.scan(step, v0, x_seq)
    return spikes


if __name__ == "__main__":
    key = jax.random.PRNGKey(0)
    T, Bsz, C, H, W = 8, 2, 4, 16, 16
    x_seq = jax.random.normal(key, (T, Bsz, C, H, W), dtype=jnp.float32)

    out = linear_node_multi_step(x_seq)
    out = jax.block_until_ready(out)

    ref = _reference(x_seq)
    np.testing.assert_allclose(np.asarray(out), np.asarray(ref), rtol=0, atol=0)

    print("KERNEL_OK")
</pallas_src>

<mosaic_0001>
module attributes {stable_mosaic.version = 11 : i64} {
  func.func @_linear_node_kernel(%arg0: i32, %arg1: i32, %arg2: memref<8x16x128xf32, #tpu.memory_space<vmem>>, %arg3: memref<8x16x128xf32, #tpu.memory_space<vmem>>, %arg4: memref<16x128xf32, #tpu.memory_space<vmem>>) attributes {dimension_semantics = [#tpu.dimension_semantics<parallel>, #tpu.dimension_semantics<arbitrary>], iteration_bounds = array<i64: 1, 1>, scalar_prefetch = 0 : i64, scratch_operands = 1 : i64, tpu.core_type = #tpu.core_type<tc>, window_params = [{transform_indices = @transform_0, window_bounds = array<i64: 8, 16, 128>}, {transform_indices = @transform_1, window_bounds = array<i64: 8, 16, 128>}]} {
    %c0_i32 = arith.constant 0 : i32
    %0 = arith.cmpi eq, %arg1, %c0_i32 : i32
    %c1_i32 = arith.constant 1 : i32
    %1 = arith.addi %arg1, %c1_i32 : i32
    %c1_i32_0 = arith.constant 1 : i32
    %2 = arith.cmpi slt, %1, %c1_i32_0 : i32
    %c0_i32_1 = arith.constant 0 : i32
    %c1_i32_2 = arith.constant 1 : i32
    %3 = arith.muli %c0_i32_1, %c1_i32_2 : i32
    %c0_i32_3 = arith.constant 0 : i32
    %4 = arith.addi %c0_i32_3, %3 : i32
    %c16_i32 = arith.constant 16 : i32
    %5 = arith.muli %4, %c16_i32 : i32
    %6 = tpu.assume_multiple %5, 16 : i32
    %7 = arith.index_cast %6 : i32 to index
    %c0 = arith.constant 0 : index
    %8 = vector.load %arg4[%7, %c0] : memref<16x128xf32, #tpu.memory_space<vmem>>, vector<16x128xf32>
    %cst = arith.constant 0.000000e+00 : f32
    %9 = vector.broadcast %cst : f32 to vector<16x128xf32>
    %10 = arith.select %0, %9, %8 : vector<16x128xf32>
    %c0_i32_4 = arith.constant 0 : i32
    %11 = arith.index_cast %c0_i32_4 : i32 to index
    %12 = arith.index_cast %6 : i32 to index
    %c0_5 = arith.constant 0 : index
    %13 = vector.load %arg2[%11, %12, %c0_5] : memref<8x16x128xf32, #tpu.memory_space<vmem>>, vector<1x16x128xf32>
    %14 = vector.shape_cast %13 : vector<1x16x128xf32> to vector<16x128xf32>
    %15 = arith.addf %10, %14 : vector<16x128xf32>
    %cst_6 = arith.constant 1.000000e+00 : f32
    %16 = vector.broadcast %cst_6 : f32 to vector<16x128xf32>
    %17 = arith.cmpf oge, %15, %16 : vector<16x128xf32>
    %18 = arith.extui %17 : vector<16x128xi1> to vector<16x128xi32>
    %19 = arith.sitofp %18 : vector<16x128xi32> to vector<16x128xf32>
    %20 = arith.index_cast %c0_i32_4 : i32 to index
    %21 = arith.index_cast %6 : i32 to index
    %c0_7 = arith.constant 0 : index
    %22 = vector.load %arg3[%20, %21, %c0_7] : memref<8x16x128xf32, #tpu.memory_space<vmem>>, vector<1x16x128xf32>
    %23 = vector.shape_cast %22 : vector<1x16x128xf32> to vector<16x128xf32>
    %24 = vector.shape_cast %19 : vector<16x128xf32> to vector<1x16x128xf32>
    tpu.vector_store %arg3[%20, %21, %c0_7], %24 {strides = array<i32>} : memref<8x16x128xf32, #tpu.memory_space<vmem>>, vector<1x16x128xf32>,
    %cst_8 = arith.constant 0.000000e+00 : f32
    %25 = vector.broadcast %cst_8 : f32 to vector<16x128xf32>
    %26 = arith.select %17, %25, %15 : vector<16x128xi1>, vector<16x128xf32>
    %c1_i32_9 = arith.constant 1 : i32
    %27 = arith.index_cast %c1_i32_9 : i32 to index
    %28 = arith.index_cast %6 : i32 to index
    %c0_10 = arith.constant 0 : index
    %29 = vector.load %arg2[%27, %28, %c0_10] : memref<8x16x128xf32, #tpu.memory_space<vmem>>, vector<1x16x128xf32>
    %30 = vector.shape_cast %29 : vector<1x16x128xf32> to vector<16x128xf32>
    %31 = arith.addf %26, %30 : vector<16x128xf32>
    %cst_11 = arith.constant 1.000000e+00 : f32
    %32 = vector.broadcast %cst_11 : f32 to vector<16x128xf32>
    %33 = arith.cmpf oge, %31, %32 : vector<16x128xf32>
    %34 = arith.extui %33 : vector<16x128xi1> to vector<16x128xi32>
    %35 = arith.sitofp %34 : vector<16x128xi32> to vector<16x128xf32>
    %36 = arith.index_cast %c1_i32_9 : i32 to index
    %37 = arith.index_cast %6 : i32 to index
    %c0_12 = arith.constant 0 : index
    %38 = vector.load %arg3[%36, %37, %c0_12] : memref<8x16x128xf32, #tpu.memory_space<vmem>>, vector<1x16x128xf32>
    %39 = vector.shape_cast %38 : vector<1x16x128xf32> to vector<16x128xf32>
    %40 = vector.shape_cast %35 : vector<16x128xf32> to vector<1x16x128xf32>
    tpu.vector_store %arg3[%36, %37, %c0_12], %40 {strides = array<i32>} : memref<8x16x128xf32, #tpu.memory_space<vmem>>, vector<1x16x128xf32>,
    %cst_13 = arith.constant 0.000000e+00 : f32
    %41 = vector.broadcast %cst_13 : f32 to vector<16x128xf32>
    %42 = arith.select %33, %41, %31 : vector<16x128xi1>, vector<16x128xf32>
    %c2_i32 = arith.constant 2 : i32
    %43 = arith.index_cast %c2_i32 : i32 to index
    %44 = arith.index_cast %6 : i32 to index
    %c0_14 = arith.constant 0 : index
    %45 = vector.load %arg2[%43, %44, %c0_14] : memref<8x16x128xf32, #tpu.memory_space<vmem>>, vector<1x16x128xf32>
    %46 = vector.shape_cast %45 : vector<1x16x128xf32> to vector<16x128xf32>
    %47 = arith.addf %42, %46 : vector<16x128xf32>
    %cst_15 = arith.constant 1.000000e+00 : f32
    %48 = vector.broadcast %cst_15 : f32 to vector<16x128xf32>
    %49 = arith.cmpf oge, %47, %48 : vector<16x128xf32>
    %50 = arith.extui %49 : vector<16x128xi1> to vector<16x128xi32>
    %51 = arith.sitofp %50 : vector<16x128xi32> to vector<16x128xf32>
    %52 = arith.index_cast %c2_i32 : i32 to index
    %53 = arith.index_cast %6 : i32 to index
    %c0_16 = arith.constant 0 : index
    %54 = vector.load %arg3[%52, %53, %c0_16] : memref<8x16x128xf32, #tpu.memory_space<vmem>>, vector<1x16x128xf32>
    %55 = vector.shape_cast %54 : vector<1x16x128xf32> to vector<16x128xf32>
    %56 = vector.shape_cast %51 : vector<16x128xf32> to vector<1x16x128xf32>
    tpu.vector_store %arg3[%52, %53, %c0_16], %56 {strides = array<i32>} : memref<8x16x128xf32, #tpu.memory_space<vmem>>, vector<1x16x128xf32>,
    %cst_17 = arith.constant 0.000000e+00 : f32
    %57 = vector.broadcast %cst_17 : f32 to vector<16x128xf32>
    %58 = arith.select %49, %57, %47 : vector<16x128xi1>, vector<16x128xf32>
    %c3_i32 = arith.constant 3 : i32
    %59 = arith.index_cast %c3_i32 : i32 to index
    %60 = arith.index_cast %6 : i32 to index
    %c0_18 = arith.constant 0 : index
    %61 = vector.load %arg2[%59, %60, %c0_18] : memref<8x16x128xf32, #tpu.memory_space<vmem>>, vector<1x16x128xf32>
    %62 = vector.shape_cast %61 : vector<1x16x128xf32> to vector<16x128xf32>
    %63 = arith.addf %58, %62 : vector<16x128xf32>
    %cst_19 = arith.constant 1.000000e+00 : f32
    %64 = vector.broadcast %cst_19 : f32 to vector<16x128xf32>
    %65 = arith.cmpf oge, %63, %64 : vector<16x128xf32>
    %66 = arith.extui %65 : vector<16x128xi1> to vector<16x128xi32>
    %67 = arith.sitofp %66 : vector<16x128xi32> to vector<16x128xf32>
    %68 = arith.index_cast %c3_i32 : i32 to index
    %69 = arith.index_cast %6 : i32 to index
    %c0_20 = arith.constant 0 : index
    %70 = vector.load %arg3[%68, %69, %c0_20] : memref<8x16x128xf32, #tpu.memory_space<vmem>>, vector<1x16x128xf32>
    %71 = vector.shape_cast %70 : vector<1x16x128xf32> to vector<16x128xf32>
    %72 = vector.shape_cast %67 : vector<16x128xf32> to vector<1x16x128xf32>
    tpu.vector_store %arg3[%68, %69, %c0_20], %72 {strides = array<i32>} : memref<8x16x128xf32, #tpu.memory_space<vmem>>, vector<1x16x128xf32>,
    %cst_21 = arith.constant 0.000000e+00 : f32
    %73 = vector.broadcast %cst_21 : f32 to vector<16x128xf32>
    %74 = arith.select %65, %73, %63 : vector<16x128xi1>, vector<16x128xf32>
    %c4_i32 = arith.constant 4 : i32
    %75 = arith.index_cast %c4_i32 : i32 to index
    %76 = arith.index_cast %6 : i32 to index
    %c0_22 = arith.constant 0 : index
    %77 = vector.load %arg2[%75, %76, %c0_22] : memref<8x16x128xf32, #tpu.memory_space<vmem>>, vector<1x16x128xf32>
    %78 = vector.shape_cast %77 : vector<1x16x128xf32> to vector<16x128xf32>
    %79 = arith.addf %74, %78 : vector<16x128xf32>
    %cst_23 = arith.constant 1.000000e+00 : f32
    %80 = vector.broadcast %cst_23 : f32 to vector<16x128xf32>
    %81 = arith.cmpf oge, %79, %80 : vector<16x128xf32>
    %82 = arith.extui %81 : vector<16x128xi1> to vector<16x128xi32>
    %83 = arith.sitofp %82 : vector<16x128xi32> to vector<16x128xf32>
    %84 = arith.index_cast %c4_i32 : i32 to index
    %85 = arith.index_cast %6 : i32 to index
    %c0_24 = arith.constant 0 : index
    %86 = vector.load %arg3[%84, %85, %c0_24] : memref<8x16x128xf32, #tpu.memory_space<vmem>>, vector<1x16x128xf32>
    %87 = vector.shape_cast %86 : vector<1x16x128xf32> to vector<16x128xf32>
    %88 = vector.shape_cast %83 : vector<16x128xf32> to vector<1x16x128xf32>
    tpu.vector_store %arg3[%84, %85, %c0_24], %88 {strides = array<i32>} : memref<8x16x128xf32, #tpu.memory_space<vmem>>, vector<1x16x128xf32>,
    %cst_25 = arith.constant 0.000000e+00 : f32
    %89 = vector.broadcast %cst_25 : f32 to vector<16x128xf32>
    %90 = arith.select %81, %89, %79 : vector<16x128xi1>, vector<16x128xf32>
    %c5_i32 = arith.constant 5 : i32
    %91 = arith.index_cast %c5_i32 : i32 to index
    %92 = arith.index_cast %6 : i32 to index
    %c0_26 = arith.constant 0 : index
    %93 = vector.load %arg2[%91, %92, %c0_26] : memref<8x16x128xf32, #tpu.memory_space<vmem>>, vector<1x16x128xf32>
    %94 = vector.shape_cast %93 : vector<1x16x128xf32> to vector<16x128xf32>
    %95 = arith.addf %90, %94 : vector<16x128xf32>
    %cst_27 = arith.constant 1.000000e+00 : f32
    %96 = vector.broadcast %cst_27 : f32 to vector<16x128xf32>
    %97 = arith.cmpf oge, %95, %96 : vector<16x128xf32>
    %98 = arith.extui %97 : vector<16x128xi1> to vector<16x128xi32>
    %99 = arith.sitofp %98 : vector<16x128xi32> to vector<16x128xf32>
    %100 = arith.index_cast %c5_i32 : i32 to index
    %101 = arith.index_cast %6 : i32 to index
    %c0_28 = arith.constant 0 : index
    %102 = vector.load %arg3[%100, %101, %c0_28] : memref<8x16x128xf32, #tpu.memory_space<vmem>>, vector<1x16x128xf32>
    %103 = vector.shape_cast %102 : vector<1x16x128xf32> to vector<16x128xf32>
    %104 = vector.shape_cast %99 : vector<16x128xf32> to vector<1x16x128xf32>
    tpu.vector_store %arg3[%100, %101, %c0_28], %104 {strides = array<i32>} : memref<8x16x128xf32, #tpu.memory_space<vmem>>, vector<1x16x128xf32>,
    %cst_29 = arith.constant 0.000000e+00 : f32
    %105 = vector.broadcast %cst_29 : f32 to vector<16x128xf32>
    %106 = arith.select %97, %105, %95 : vector<16x128xi1>, vector<16x128xf32>
    %c6_i32 = arith.constant 6 : i32
    %107 = arith.index_cast %c6_i32 : i32 to index
    %108 = arith.index_cast %6 : i32 to index
    %c0_30 = arith.constant 0 : index
    %109 = vector.load %arg2[%107, %108, %c0_30] : memref<8x16x128xf32, #tpu.memory_space<vmem>>, vector<1x16x128xf32>
    %110 = vector.shape_cast %109 : vector<1x16x128xf32> to vector<16x128xf32>
    %111 = arith.addf %106, %110 : vector<16x128xf32>
    %cst_31 = arith.constant 1.000000e+00 : f32
    %112 = vector.broadcast %cst_31 : f32 to vector<16x128xf32>
    %113 = arith.cmpf oge, %111, %112 : vector<16x128xf32>
    %114 = arith.extui %113 : vector<16x128xi1> to vector<16x128xi32>
    %115 = arith.sitofp %114 : vector<16x128xi32> to vector<16x128xf32>
    %116 = arith.index_cast %c6_i32 : i32 to index
    %117 = arith.index_cast %6 : i32 to index
    %c0_32 = arith.constant 0 : index
    %118 = vector.load %arg3[%116, %117, %c0_32] : memref<8x16x128xf32, #tpu.memory_space<vmem>>, vector<1x16x128xf32>
    %119 = vector.shape_cast %118 : vector<1x16x128xf32> to vector<16x128xf32>
    %120 = vector.shape_cast %115 : vector<16x128xf32> to vector<1x16x128xf32>
    tpu.vector_store %arg3[%116, %117, %c0_32], %120 {strides = array<i32>} : memref<8x16x128xf32, #tpu.memory_space<vmem>>, vector<1x16x128xf32>,
    %cst_33 = arith.constant 0.000000e+00 : f32
    %121 = vector.broadcast %cst_33 : f32 to vector<16x128xf32>
    %122 = arith.select %113, %121, %111 : vector<16x128xi1>, vector<16x128xf32>
    %c7_i32 = arith.constant 7 : i32
    %123 = arith.index_cast %c7_i32 : i32 to index
    %124 = arith.index_cast %6 : i32 to index
    %c0_34 = arith.constant 0 : index
    %125 = vector.load %arg2[%123, %124, %c0_34] : memref<8x16x128xf32, #tpu.memory_space<vmem>>, vector<1x16x128xf32>
    %126 = vector.shape_cast %125 : vector<1x16x128xf32> to vector<16x128xf32>
    %127 = arith.addf %122, %126 : vector<16x128xf32>
    %cst_35 = arith.constant 1.000000e+00 : f32
    %128 = vector.broadcast %cst_35 : f32 to vector<16x128xf32>
    %129 = arith.cmpf oge, %127, %128 : vector<16x128xf32>
    %130 = arith.extui %129 : vector<16x128xi1> to vector<16x128xi32>
    %131 = arith.sitofp %130 : vector<16x128xi32> to vector<16x128xf32>
    %132 = arith.index_cast %c7_i32 : i32 to index
    %133 = arith.index_cast %6 : i32 to index
    %c0_36 = arith.constant 0 : index
    %134 = vector.load %arg3[%132, %133, %c0_36] : memref<8x16x128xf32, #tpu.memory_space<vmem>>, vector<1x16x128xf32>
    %135 = vector.shape_cast %134 : vector<1x16x128xf32> to vector<16x128xf32>
    %136 = vector.shape_cast %131 : vector<16x128xf32> to vector<1x16x128xf32>
    tpu.vector_store %arg3[%132, %133, %c0_36], %136 {strides = array<i32>} : memref<8x16x128xf32, #tpu.memory_space<vmem>>, vector<1x16x128xf32>,
    %cst_37 = arith.constant 0.000000e+00 : f32
    %137 = vector.broadcast %cst_37 : f32 to vector<16x128xf32>
    %138 = arith.select %129, %137, %127 : vector<16x128xi1>, vector<16x128xf32>
    %c8_i32 = arith.constant 8 : i32
    %139 = arith.extui %2 : i1 to i32
    %c0_i32_38 = arith.constant 0 : i32
    %140 = arith.cmpi ne, %139, %c0_i32_38 : i32
    scf.if %140 {
      %141 = arith.index_cast %6 : i32 to index
      %c0_40 = arith.constant 0 : index
      %142 = vector.load %arg4[%141, %c0_40] : memref<16x128xf32, #tpu.memory_space<vmem>>, vector<16x128xf32>
      tpu.vector_store %arg4[%141, %c0_40], %138 {strides = array<i32>} : memref<16x128xf32, #tpu.memory_space<vmem>>, vector<16x128xf32>,
    } else {
    }
    %c1_i32_39 = arith.constant 1 : i32
    return
  }
  func.func @transform_0(%arg0: i32, %arg1: i32) -> (i32, i32, i32) {
    %c0_i32 = arith.constant 0 : i32
    %c0_i32_0 = arith.constant 0 : i32
    return %arg1, %arg0, %c0_i32 : i32, i32, i32
  }
  func.func @transform_1(%arg0: i32, %arg1: i32) -> (i32, i32, i32) {
    %c0_i32 = arith.constant 0 : i32
    %c0_i32_0 = arith.constant 0 : i32
    return %arg1, %arg0, %c0_i32 : i32, i32, i32
  }
}

</mosaic_0001>

<llo_original>
// kernel: tpu_custom_call.1
$region0: #{tpu_custom_call.1}
  #allocation0 [shape = 'u32[]', space=smem, size = 0x4, offset = 0x4, fixed_abs, tag = 'smem constant byte address 0x4 - core index']
  #allocation1 [shape = 'u32[72,128]{1,0:T(1,128)}', space=vmem, size = 0x9000, scoped, tag = 'internal scratch']
  #allocation2 [shape = 'f32[16,128]{1,0:T(8,128)}', space=vmem, size = 0x2000, scoped, tag = 'scratch operand']
  %s0 = inlined_call_operand.hbm [shape: f32[8,16,128], index: 0, kind: input, shape index: {}]
  %s1 = inlined_call_operand.hbm [shape: f32[8,16,128], index: 1, kind: output, shape index: {}]
  %s2 = sld [smem:[#allocation0]]
  $region22: #{tpu_custom_call.1} parent=0
    _
  %s4 = ssub.s32 1, %s2
  %s5 = scalar_select 0, %s4, %s2
  $region1: #{tpu_custom_call.1} parent=0
    #allocation3 [shape = 'u8[65536]{0}', space=vmem, size = 0x10000, scoped, tag = 'input window, operand 0, single buffered']
    #allocation4 [shape = 's32[1]{0}', space=sflag, size = 0x4, scoped, tag = 'scoped memory for tpu_custom_call.1']
    #allocation5 [shape = 's32[1]{0}', space=sflag, size = 0x4, scoped, tag = 'scoped memory for tpu_custom_call.1']
    #allocation6 [shape = 'u8[65536]{0}', space=vmem, size = 0x10000, scoped, tag = 'output window, operand 0, single buffered']
    %6 = vsyncpa [#allocation4], 0
    %7 = vsyncpa [#allocation5], 0
    // Predicated region
    $region2: #{tpu_custom_call.1} parent=1 // pred_check
      _
    $region3: #{tpu_custom_call.1} parent=1 // pred_check_branch
      %9 = sbr.rel (0) target = $region5
    $region4: #{tpu_custom_call.1} parent=1 // pred_region
      %11 = vsyncadd [#allocation4], 0
      %s12 = sshll.u32 %s0, 4
      %s13 = int_to_ptr.hbm [resolvable:$true] %s12
      %s14 = sshll.u32 [#allocation3], 4
      %s15 = int_to_ptr.vmem [resolvable:$true] %s14
      %20 = dma.hbm_to_vmem [thread:$0]  %s13, 2048, %s15, [#allocation4], 128, 128, 8
    $region5: #{tpu_custom_call.1} parent=1 // pred_fallthru
      _
    // Predicated region
    $region6: #{tpu_custom_call.1} parent=1 // pred_check
      _
    $region7: #{tpu_custom_call.1} parent=1 // pred_check_branch
      %22 = sbr.rel (0) target = $region9
    $region8: #{tpu_custom_call.1} parent=1 // pred_region
      %24 = dma.done [#allocation4], 2048
    $region9: #{tpu_custom_call.1} parent=1 // pred_fallthru
      _
    %p25 = scmp.eq.s32.totalorder 0, 0
    %s26 = sadd.s32 0, 1
    %p27 = scmp.lt.s32.totalorder %s26, 1
    %v28 = vld [vmem:[#allocation2] sm:$0xff]
    %v29 = vld [vmem:[#allocation2 + $0x8] sm:$0xff]
    %s30 = scalar_select %p25, 1, 0
    %v31 = vstv %s30
    %vm32 = vcmp.eq.s32.totalorder %v31, 1
    %v33 = vsel %vm32, 0.0, %v28
    %v34 = vsel %vm32, 0.0, %v29
    %v35 = vld [vmem:[#allocation3] sm:$0xff]
    %v36 = vld [vmem:[#allocation3 + $0x8] sm:$0xff]
    %v37 = vadd.f32 %v33, %v35
    %v38 = vadd.f32 %v34, %v36
    %vm39 = vcmp.ge.f32.partialorder %v37, 1.0
    %vm40 = vcmp.ge.f32.partialorder %v38, 1.0
    %v41 = vsel %vm39, 1, 0
    %v42 = vsel %vm40, 1, 0
    %v43 = vcvt.s32.f32 %v41
    %v44 = vcvt.s32.f32 %v42
    %45 = vst [vmem:[#allocation6] sm:$0xff] %v43
    %46 = vst [vmem:[#allocation6 + $0x8] sm:$0xff] %v44
    %v47 = vsel %vm39, 0.0, %v37
    %v48 = vsel %vm40, 0.0, %v38
    %s49 = sadd.s32 0, 16
    %s50 = scalar_lea.vmem [#allocation3], %s49
    %v51 = vld [vmem:[%s50] sm:$0xff]
    %v52 = vld [vmem:[%s50 + $0x8] sm:$0xff]
    %v53 = vadd.f32 %v47, %v51
    %v54 = vadd.f32 %v48, %v52
    %vm55 = vcmp.ge.f32.partialorder %v53, 1.0
    %vm56 = vcmp.ge.f32.partialorder %v54, 1.0
    %v57 = vsel %vm55, 1, 0
    %v58 = vsel %vm56, 1, 0
    %v59 = vcvt.s32.f32 %v57
    %v60 = vcvt.s32.f32 %v58
    %s61 = scalar_lea.vmem [#allocation6], %s49
    %62 = vst [vmem:[%s61] sm:$0xff] %v59
    %63 = vst [vmem:[%s61 + $0x8] sm:$0xff] %v60
    %v64 = vsel %vm55, 0.0, %v53
    %v65 = vsel %vm56, 0.0, %v54
    %s66 = sadd.s32 0, 32
    %s67 = scalar_lea.vmem [#allocation3], %s66
    %v68 = vld [vmem:[%s67] sm:$0xff]
    %v69 = vld [vmem:[%s67 + $0x8] sm:$0xff]
    %v70 = vadd.f32 %v64, %v68
    %v71 = vadd.f32 %v65, %v69
    %vm72 = vcmp.ge.f32.partialorder %v70, 1.0
    %vm73 = vcmp.ge.f32.partialorder %v71, 1.0
    %v74 = vsel %vm72, 1, 0
    %v75 = vsel %vm73, 1, 0
    %v76 = vcvt.s32.f32 %v74
    %v77 = vcvt.s32.f32 %v75
    %s78 = scalar_lea.vmem [#allocation6], %s66
    %79 = vst [vmem:[%s78] sm:$0xff] %v76
    %80 = vst [vmem:[%s78 + $0x8] sm:$0xff] %v77
    %v81 = vsel %vm72, 0.0, %v70
    %v82 = vsel %vm73, 0.0, %v71
    %s83 = sadd.s32 0, 48
    %s84 = scalar_lea.vmem [#allocation3], %s83
    %v85 = vld [vmem:[%s84] sm:$0xff]
    %v86 = vld [vmem:[%s84 + $0x8] sm:$0xff]
    %v87 = vadd.f32 %v81, %v85
    %v88 = vadd.f32 %v82, %v86
    %vm89 = vcmp.ge.f32.partialorder %v87, 1.0
    %vm90 = vcmp.ge.f32.partialorder %v88, 1.0
    %v91 = vsel %vm89, 1, 0
    %v92 = vsel %vm90, 1, 0
    %v93 = vcvt.s32.f32 %v91
    %v94 = vcvt.s32.f32 %v92
    %s95 = scalar_lea.vmem [#allocation6], %s83
    %96 = vst [vmem:[%s95] sm:$0xff] %v93
    %97 = vst [vmem:[%s95 + $0x8] sm:$0xff] %v94
    %v98 = vsel %vm89, 0.0, %v87
    %v99 = vsel %vm90, 0.0, %v88
    %s100 = sadd.s32 0, 64
    %s101 = scalar_lea.vmem [#allocation3], %s100
    %v102 = vld [vmem:[%s101] sm:$0xff]
    %v103 = vld [vmem:[%s101 + $0x8] sm:$0xff]
    %v104 = vadd.f32 %v98, %v102
    %v105 = vadd.f32 %v99, %v103
    %vm106 = vcmp.ge.f32.partialorder %v104, 1.0
    %vm107 = vcmp.ge.f32.partialorder %v105, 1.0
    %v108 = vsel %vm106, 1, 0
    %v109 = vsel %vm107, 1, 0
    %v110 = vcvt.s32.f32 %v108
    %v111 = vcvt.s32.f32 %v109
    %s112 = scalar_lea.vmem [#allocation6], %s100
    %113 = vst [vmem:[%s112] sm:$0xff] %v110
    %114 = vst [vmem:[%s112 + $0x8] sm:$0xff] %v111
    %v115 = vsel %vm106, 0.0, %v104
    %v116 = vsel %vm107, 0.0, %v105
    %s117 = sadd.s32 0, 80
    %s118 = scalar_lea.vmem [#allocation3], %s117
    %v119 = vld [vmem:[%s118] sm:$0xff]
    %v120 = vld [vmem:[%s118 + $0x8] sm:$0xff]
    %v121 = vadd.f32 %v115, %v119
    %v122 = vadd.f32 %v116, %v120
    %vm123 = vcmp.ge.f32.partialorder %v121, 1.0
    %vm124 = vcmp.ge.f32.partialorder %v122, 1.0
    %v125 = vsel %vm123, 1, 0
    %v126 = vsel %vm124, 1, 0
    %v127 = vcvt.s32.f32 %v125
    %v128 = vcvt.s32.f32 %v126
    %s129 = scalar_lea.vmem [#allocation6], %s117
    %130 = vst [vmem:[%s129] sm:$0xff] %v127
    %131 = vst [vmem:[%s129 + $0x8] sm:$0xff] %v128
    %v132 = vsel %vm123, 0.0, %v121
    %v133 = vsel %vm124, 0.0, %v122
    %s134 = sadd.s32 0, 96
    %s135 = scalar_lea.vmem [#allocation3], %s134
    %v136 = vld [vmem:[%s135] sm:$0xff]
    %v137 = vld [vmem:[%s135 + $0x8] sm:$0xff]
    %v138 = vadd.f32 %v132, %v136
    %v139 = vadd.f32 %v133, %v137
    %vm140 = vcmp.ge.f32.partialorder %v138, 1.0
    %vm141 = vcmp.ge.f32.partialorder %v139, 1.0
    %v142 = vsel %vm140, 1, 0
    %v143 = vsel %vm141, 1, 0
    %v144 = vcvt.s32.f32 %v142
    %v145 = vcvt.s32.f32 %v143
    %s146 = scalar_lea.vmem [#allocation6], %s134
    %147 = vst [vmem:[%s146] sm:$0xff] %v144
    %148 = vst [vmem:[%s146 + $0x8] sm:$0xff] %v145
    %v149 = vsel %vm140, 0.0, %v138
    %v150 = vsel %vm141, 0.0, %v139
    %s151 = sadd.s32 0, 112
    %s152 = scalar_lea.vmem [#allocation3], %s151
    %v153 = vld [vmem:[%s152] sm:$0xff]
    %v154 = vld [vmem:[%s152 + $0x8] sm:$0xff]
    %v155 = vadd.f32 %v149, %v153
    %v156 = vadd.f32 %v150, %v154
    %vm157 = vcmp.ge.f32.partialorder %v155, 1.0
    %vm158 = vcmp.ge.f32.partialorder %v156, 1.0
    %v159 = vsel %vm157, 1, 0
    %v160 = vsel %vm158, 1, 0
    %v161 = vcvt.s32.f32 %v159
    %v162 = vcvt.s32.f32 %v160
    %s163 = scalar_lea.vmem [#allocation6], %s151
    %164 = vst [vmem:[%s163] sm:$0xff] %v161
    %165 = vst [vmem:[%s163 + $0x8] sm:$0xff] %v162
    %v166 = vsel %vm157, 0.0, %v155
    %v167 = vsel %vm158, 0.0, %v156
    // Predicated region
    $region10: #{tpu_custom_call.1} parent=1 // pred_check
      %p168 = pneg %p27
    $region11: #{tpu_custom_call.1} parent=1 // pred_check_branch
      %170 = sbr.rel (%p168) target = $region13
    $region12: #{tpu_custom_call.1} parent=1 // pred_region
      %171 = vst [vmem:[#allocation2] sm:$0xff] %v166
      %172 = vst [vmem:[#allocation2 + $0x8] sm:$0xff] %v167
    $region13: #{tpu_custom_call.1} parent=1 // pred_fallthru
      _
    // Predicated region
    $region14: #{tpu_custom_call.1} parent=1 // pred_check
      _
    $region15: #{tpu_custom_call.1} parent=1 // pred_check_branch
      %174 = sbr.rel (0) target = $region17
    $region16: #{tpu_custom_call.1} parent=1 // pred_region
      %176 = vsyncadd [#allocation5], 0
      %s177 = sshll.u32 [#allocation6], 4
      %s178 = int_to_ptr.vmem [resolvable:$true] %s177
      %s179 = sshll.u32 %s1, 4
      %s180 = int_to_ptr.hbm [resolvable:$true] %s179
      %185 = dma.vmem_to_hbm [thread:$0]  %s178, 2048, %s180, [#allocation5], 128, 128, 8
    $region17: #{tpu_custom_call.1} parent=1 // pred_fallthru
      _
    // Predicated region
    $region18: #{tpu_custom_call.1} parent=1 // pred_check
      _
    $region19: #{tpu_custom_call.1} parent=1 // pred_check_branch
      %187 = sbr.rel (0) target = $region21
    $region20: #{tpu_custom_call.1} parent=1 // pred_region
      %189 = dma.done [#allocation5], 2048
    $region21: #{tpu_custom_call.1} parent=1 // pred_fallthru
      _
    %190 = vsyncpa [#allocation4], 1
    %191 = vsyncpa [#allocation5], 1

</llo_original>
